<compile_context>
chip_gen: v6e
topology: v6e:2x2x1
jax: 0.10.0
libtpu: 0.0.40
codegen_flags: <defaults>
</compile_context>

<pallas_src>
import functools

import numpy as np

import jax
import jax.numpy as jnp
from jax.experimental import pallas as pl
from jax.experimental.pallas import tpu as pltpu

EPS = 1e-5


# --------------------------------------------------------------------------
# pltpu.roll direction calibration (one tiny kernel, cached).
# --------------------------------------------------------------------------
@functools.lru_cache(maxsize=None)
def _roll_sign():
    def k(x_ref, o_ref):
        o_ref[...] = pltpu.roll(x_ref[...], shift=1, axis=1)

    x = jnp.tile(jnp.arange(128, dtype=jnp.float32), (8, 1))
    r = pl.pallas_call(k, out_shape=jax.ShapeDtypeStruct((8, 128), jnp.float32))(x)
    # jnp.roll convention: last element wraps to the front -> shifted[m]=x[m+off] uses shift=-off.
    return -1 if int(r[0, 0]) == 127 else 1


# --------------------------------------------------------------------------
# Static layout plan (channel padding, slab offsets).  Shared by the packer,
# the kernel factory and the parameter initializer.
# --------------------------------------------------------------------------
def _pad8(c):
    return ((int(c) + 7) // 8) * 8


def _layer_defs(C, OC):
    conv_defs = (
        ("l0", 1, C, C),
        ("r1c1", 3, C, 2 * C), ("r1c2", 3, 2 * C, 2 * C), ("r1sc", 1, C, 2 * C),
        ("r2c1", 3, 2 * C, 4 * C), ("r2c2", 3, 4 * C, 4 * C), ("r2sc", 1, 2 * C, 4 * C),
        ("r3c1", 3, 4 * C, 2 * C), ("r3c2", 3, 2 * C, 2 * C), ("r3sc", 1, 4 * C, 2 * C),
        ("l4", 1, 2 * C, C),
        ("up", 3, C, C),
        ("co", 3, C, OC),
    )
    bn_defs = (
        ("r1n1", C), ("r1n2", 2 * C),
        ("r2n1", 2 * C), ("r2n2", 4 * C),
        ("r3n1", 4 * C), ("r3n2", 2 * C),
        ("on", C),
    )
    return conv_defs, bn_defs


def _make_plan(C, OC):
    conv_defs, bn_defs = _layer_defs(C, OC)
    convs, bns = {}, {}
    row = col = kmax = 0
    cmax = 8
    for name, k, cin, cout in conv_defs:
        cinp, coutp = _pad8(cin), _pad8(cout)
        kk = cinp if k == 1 else 9 * cinp
        convs[name] = dict(kind=k, cin=cin, cout=cout, cin_pad=cinp,
                           rows=coutp, row=row, k=kk, bcol=col)
        row += coutp
        col += 1
        kmax = max(kmax, kk)
        cmax = max(cmax, coutp, cinp)
    for name, cn in bn_defs:
        bns[name] = (col, col + 1, _pad8(cn), cn)
        col += 2
        cmax = max(cmax, _pad8(cn))
    return dict(convs=convs, bns=bns, wshape=(row, kmax), vshape=(cmax, col))


# --------------------------------------------------------------------------
# Host-side precomputed constants (review items: host tap masks, host sel).
# --------------------------------------------------------------------------
def _make_tap_masks(H, W):
    hw = np.arange(H * W)
    hh, ww = hw // W, hw % W
    m = np.zeros((9, 1, H * W), np.float32)
    for t in range(9):
        dy, dx = t // 3 - 1, t % 3 - 1
        m[t, 0] = ((hh + dy >= 0) & (hh + dy < H) &
                   (ww + dx >= 0) & (ww + dx < W)).astype(np.float32)
    return m


def _make_upsample_sel(H, W):
    # one-hot (H*W, 4*H*W): out[:, m2] = x[:, src(m2)]  (nearest-neighbour x2)
    H2, W2 = 2 * H, 2 * W
    m2 = np.arange(H2 * W2)
    src = (m2 // W2 // 2) * W + (m2 % W2) // 2
    sel = np.zeros((H * W, H2 * W2), np.float32)
    sel[src, m2] = 1.0
    return sel


# --------------------------------------------------------------------------
# Fused decoder kernel factory
# --------------------------------------------------------------------------
def _make_decoder_kernel(plan, N, H, W, roll_sign):
    H2, W2 = 2 * H, 2 * W
    M1, M2 = H * W, H2 * W2
    convs, bns = plan["convs"], plan["bns"]
    inv_lo = 1.0 / float(N * M1)
    inv_hi = 1.0 / float(N * M2)

    def kernel(x_ref, w_ref, v_ref, mlo_ref, mhi_ref, sel_ref, o_ref):
        vv = v_ref[...]          # (CMAX, NV) f32 vector slab
        mlo = mlo_ref[...]       # (9, 1, M1) f32 boundary masks (low res)
        mhi = mhi_ref[...]       # (9, 1, M2) f32 boundary masks (high res)
        sel = sel_ref[...]       # (M1, M2) bf16 one-hot upsample matrix

        def weight(name):
            c = convs[name]
            return w_ref[c["row"]:c["row"] + c["rows"], :c["k"]].astype(jnp.bfloat16)

        def bias(name):
            c = convs[name]
            return vv[:c["rows"], c["bcol"]:c["bcol"] + 1]

        def conv1x1(xs, name):
            wgt, b = weight(name), bias(name)
            return [jnp.dot(wgt, x.astype(jnp.bfloat16),
                            preferred_element_type=jnp.float32) + b for x in xs]

        def conv3x3(xs, name, masks, ww, mm):
            # K = 9*Cpad fold: one MXU matmul per image instead of 9 K=4..16 dots.
            wgt, b = weight(name), bias(name)
            outs = []
            for x in xs:
                taps = []
                for t in range(9):
                    dy, dx = t // 3 - 1, t % 3 - 1
                    off = dy * ww + dx
                    if off == 0:
                        taps.append(x)                               # center: mask == 1
                    else:
                        sh = pltpu.roll(x, shift=(roll_sign * off) % mm, axis=1)
                        taps.append(sh * masks[t])
                stacked = jnp.concatenate(taps, axis=0).astype(jnp.bfloat16)
                outs.append(jnp.dot(wgt, stacked,
                                    preferred_element_type=jnp.float32) + b)
            return outs

        def bn_swish(xs, name, inv):
            # Training-mode BatchNorm2d (biased batch stats) fused with SiLU.
            gcol, bcol, cpad, _ = bns[name]
            g = vv[:cpad, gcol:gcol + 1]
            be = vv[:cpad, bcol:bcol + 1]
            s1 = xs[0].sum(axis=1, keepdims=True)
            s2 = (xs[0] * xs[0]).sum(axis=1, keepdims=True)
            for x in xs[1:]:
                s1 = s1 + x.sum(axis=1, keepdims=True)
                s2 = s2 + (x * x).sum(axis=1, keepdims=True)
            mean = s1 * inv
            var = s2 * inv - mean * mean            # one-pass variance
            scale = jax.lax.rsqrt(var + EPS) * g
            shift = be - mean * scale
            out = []
            for x in xs:
                y = x * scale + shift
                # silu(y) = y * sigmoid(y) = y * 0.5 * (1 + tanh(y/2))  (single EUP op)
                out.append(y * (0.5 * jnp.tanh(0.5 * y) + 0.5))
            return out

        def resblock(xs, pfx, masks, ww, mm, inv):
            hs = bn_swish(xs, pfx + "n1", inv)
            hs = conv3x3(hs, pfx + "c1", masks, ww, mm)
            hs = bn_swish(hs, pfx + "n2", inv)      # dropout(p=0) == identity
            hs = conv3x3(hs, pfx + "c2", masks, ww, mm)
            scs = conv1x1(xs, pfx + "sc")           # nin_shortcut (cin != cout for v1)
            return [s + h for s, h in zip(scs, hs)]

        xs = [x_ref[n] for n in range(N)]           # per-image (Cpad, M1)
        xs = conv1x1(xs, "l0")
        xs = resblock(xs, "r1", mlo, W, M1, inv_lo)
        xs = resblock(xs, "r2", mlo, W, M1, inv_lo)
        xs = resblock(xs, "r3", mlo, W, M1, inv_lo)
        xs = conv1x1(xs, "l4")
        # nearest-neighbour x2 upsample via the small host-built one-hot matrix
        xs = [jnp.dot(x.astype(jnp.bfloat16), sel,
                      preferred_element_type=jnp.float32) for x in xs]
        xs = conv3x3(xs, "up", mhi, W2, M2)
        xs = bn_swish(xs, "on", inv_hi)
        ys = conv3x3(xs, "co", mhi, W2, M2)
        for n in range(N):
            o_ref[n] = ys[n]

    return kernel


# --------------------------------------------------------------------------
# Model builder: one fused pallas_call, layout glue only in the wrapper.
# --------------------------------------------------------------------------
def make_simple_decoder(in_channels, out_channels, N, H, W):
    plan = _make_plan(in_channels, out_channels)
    roll_sign = _roll_sign()
    kernel = _make_decoder_kernel(plan, N, H, W, roll_sign)

    H2, W2 = 2 * H, 2 * W
    cin_pad = _pad8(in_channels)
    oc_pad = _pad8(out_channels)

    mlo = jnp.asarray(_make_tap_masks(H, W))
    mhi = jnp.asarray(_make_tap_masks(H2, W2))
    sel = jnp.asarray(_make_upsample_sel(H, W)).astype(jnp.bfloat16)

    call = pl.pallas_call(
        kernel,
        out_shape=jax.ShapeDtypeStruct((N, oc_pad, H2 * W2), jnp.float32),
        in_specs=[pl.BlockSpec(memory_space=pltpu.MemorySpace.VMEM)] * 6,
        out_specs=pl.BlockSpec(memory_space=pltpu.MemorySpace.VMEM),
    )

    @jax.jit
    def forward(x_nchw, wslab, vslab):
        xp = jnp.pad(x_nchw.astype(jnp.float32),
                     ((0, 0), (0, cin_pad - in_channels), (0, 0), (0, 0)))
        xk = xp.reshape(N, cin_pad, H * W)
        y = call(xk, wslab, vslab, mlo, mhi, sel)
        return y.reshape(N, oc_pad, H2, W2)[:, :out_channels]

    return forward


# --------------------------------------------------------------------------
# Parameter init (PyTorch Conv2d / BatchNorm2d defaults) and host-side packing
# of all leaves into two slabs (one DMA each).
# --------------------------------------------------------------------------
def init_simple_decoder_params(key, in_channels, out_channels):
    conv_defs, bn_defs = _layer_defs(in_channels, out_channels)
    params = {}
    keys = jax.random.split(key, len(conv_defs))
    for (name, k, cin, cout), kk in zip(conv_defs, keys):
        kw, kb = jax.random.split(kk)
        bound = 1.0 / float(cin * k * k) ** 0.5
        shape = (cout, cin) if k == 1 else (cout, cin, 3, 3)
        params[name] = {
            "w": jax.random.uniform(kw, shape, jnp.float32, -bound, bound),
            "b": jax.random.uniform(kb, (cout,), jnp.float32, -bound, bound),
        }
    for name, cn in bn_defs:
        params[name] = {"g": jnp.ones((cn,), jnp.float32),
                        "be": jnp.zeros((cn,), jnp.float32)}
    return params


def pack_params(params, plan):
    wslab = np.zeros(plan["wshape"], np.float32)
    vslab = np.zeros(plan["vshape"], np.float32)
    for name, c in plan["convs"].items():
        w = np.asarray(params[name]["w"], np.float32)
        b = np.asarray(params[name]["b"], np.float32)
        oc, ic, r0 = c["cout"], c["cin"], c["row"]
        if c["kind"] == 1:
            wslab[r0:r0 + oc, :ic] = w
        else:
            # torch (OC, IC, 3, 3) -> tap-major columns t*ICpad + c
            w9 = np.transpose(w, (2, 3, 0, 1)).reshape(9, oc, ic)
            icp = c["cin_pad"]
            for t in range(9):
                wslab[r0:r0 + oc, t * icp:t * icp + ic] = w9[t]
        vslab[:oc, c["bcol"]] = b
    for name, (gcol, bcol, _cpad, cn) in plan["bns"].items():
        vslab[:cn, gcol] = np.asarray(params[name]["g"], np.float32)
        vslab[:cn, bcol] = np.asarray(params[name]["be"], np.float32)
    return jnp.asarray(wslab), jnp.asarray(vslab)


# --------------------------------------------------------------------------
# Pure-JAX reference (mirrors the PyTorch module, training-mode BatchNorm).
# --------------------------------------------------------------------------
@jax.jit
def _reference_forward(x, params):
    hi = jax.lax.Precision.HIGHEST

    def conv1x1(x, w, b):
        return jnp.einsum("oc,nchw->nohw", w, x, precision=hi) + b[None, :, None, None]

    def conv3x3(x, w, b):
        y = jax.lax.conv_general_dilated(
            x, w, (1, 1), ((1, 1), (1, 1)),
            dimension_numbers=("NCHW", "OIHW", "NCHW"), precision=hi)
        return y + b[None, :, None, None]

    def bn(x, g, be):
        mean = x.mean(axis=(0, 2, 3), keepdims=True)
        var = ((x - mean) ** 2).mean(axis=(0, 2, 3), keepdims=True)
        return (x - mean) * jax.lax.rsqrt(var + EPS) * g[None, :, None, None] \
            + be[None, :, None, None]

    def silu(x):
        return x * jax.nn.sigmoid(x)

    def resblock(x, pfx):
        h = conv3x3(silu(bn(x, params[pfx + "n1"]["g"], params[pfx + "n1"]["be"])),
                    params[pfx + "c1"]["w"], params[pfx + "c1"]["b"])
        h = conv3x3(silu(bn(h, params[pfx + "n2"]["g"], params[pfx + "n2"]["be"])),
                    params[pfx + "c2"]["w"], params[pfx + "c2"]["b"])
        sc = conv1x1(x, params[pfx + "sc"]["w"], params[pfx + "sc"]["b"])
        return sc + h

    x = conv1x1(x, params["l0"]["w"], params["l0"]["b"])
    x = resblock(x, "r1")
    x = resblock(x, "r2")
    x = resblock(x, "r3")
    x = conv1x1(x, params["l4"]["w"], params["l4"]["b"])
    x = jnp.repeat(jnp.repeat(x, 2, axis=2), 2, axis=3)      # nearest x2
    x = conv3x3(x, params["up"]["w"], params["up"]["b"])
    h = silu(bn(x, params["on"]["g"], params["on"]["be"]))
    return conv3x3(h, params["co"]["w"], params["co"]["b"])


# --------------------------------------------------------------------------
if __name__ == "__main__":
    in_channels, out_channels = 4, 3
    N, H, W = 2, 16, 16

    key = jax.random.PRNGKey(0)
    kx, kp = jax.random.split(key)
    x = jax.random.normal(kx, (N, in_channels, H, W), jnp.float32)
    params = init_simple_decoder_params(kp, in_channels, out_channels)

    plan = _make_plan(in_channels, out_channels)
    wslab, vslab = pack_params(params, plan)
    forward = make_simple_decoder(in_channels, out_channels, N, H, W)

    y = jax.block_until_ready(forward(x, wslab, vslab))
    assert y.shape == (N, out_channels, 2 * H, 2 * W), y.shape
    assert bool(jnp.all(jnp.isfinite(y)))

    y_ref = jax.block_until_ready(_reference_forward(x, params))
    np.testing.assert_allclose(np.asarray(y), np.asarray(y_ref), rtol=0.1, atol=0.1)

    print("KERNEL_OK")
</pallas_src>

<mosaic_0001>
module attributes {stable_mosaic.version = 11 : i64} {
  func.func @k(%arg0: memref<8x128xf32, #tpu.memory_space<vmem>>, %arg1: memref<8x128xf32, #tpu.memory_space<vmem>>) attributes {dimension_semantics = [], scalar_prefetch = 0 : i64, scratch_operands = 0 : i64, tpu.core_type = #tpu.core_type<tc>} {
    %c0 = arith.constant 0 : index
    %c0_0 = arith.constant 0 : index
    %0 = vector.load %arg0[%c0, %c0_0] : memref<8x128xf32, #tpu.memory_space<vmem>>, vector<8x128xf32>
    %c1_i32 = arith.constant 1 : i32
    %1 = tpu.dynamic_rotate %0 by %c1_i32 dim 1 : vector<8x128xf32>, i32 -> vector<8x128xf32>
    %c0_1 = arith.constant 0 : index
    %c0_2 = arith.constant 0 : index
    %2 = vector.load %arg1[%c0_1, %c0_2] : memref<8x128xf32, #tpu.memory_space<vmem>>, vector<8x128xf32>
    tpu.vector_store %arg1[%c0_1, %c0_2], %1 {strides = array<i32>} : memref<8x128xf32, #tpu.memory_space<vmem>>, vector<8x128xf32>,
    return
  }
}

</mosaic_0001>

<llo_original>
// kernel: tpu_custom_call.1
$region0: #{tpu_custom_call.1}
  #allocation0 [shape = 'u32[]', space=smem, size = 0x4, offset = 0x4, fixed_abs, tag = 'smem constant byte address 0x4 - core index']
  #allocation1 [shape = 'u32[144,128]{1,0:T(1,128)}', space=vmem, size = 0x12000, scoped, tag = 'internal scratch']
  %s0 = inlined_call_operand.hbm [shape: f32[8,128], index: 0, kind: input, shape index: {}]
  %s1 = inlined_call_operand.hbm [shape: f32[8,128], index: 1, kind: output, shape index: {}]
  %s2 = sld [smem:[#allocation0]]
  $region18: #{tpu_custom_call.1} parent=0
    _
  %s4 = ssub.s32 1, %s2
  %s5 = scalar_select 0, %s4, %s2
  $region1: #{tpu_custom_call.1} parent=0
    #allocation2 [shape = 'u8[4096]{0}', space=vmem, size = 0x1000, scoped, tag = 'input window, operand 0, single buffered']
    #allocation3 [shape = 's32[1]{0}', space=sflag, size = 0x4, scoped, tag = 'scoped memory for tpu_custom_call.1']
    #allocation4 [shape = 's32[1]{0}', space=sflag, size = 0x4, scoped, tag = 'scoped memory for tpu_custom_call.1']
    #allocation5 [shape = 'u8[4096]{0}', space=vmem, size = 0x1000, scoped, tag = 'output window, operand 0, single buffered']
    %6 = vsyncpa [#allocation3], 0
    %7 = vsyncpa [#allocation4], 0
    // Predicated region
    $region2: #{tpu_custom_call.1} parent=1 // pred_check
      _
    $region3: #{tpu_custom_call.1} parent=1 // pred_check_branch
      %9 = sbr.rel (0) target = $region5
    $region4: #{tpu_custom_call.1} parent=1 // pred_region
      %s11 = ssub.s32 128, 128
      %12 = vsyncadd [#allocation3], %s11
      %s14 = sshll.u32 [#allocation2], 4
      %s15 = int_to_ptr.vmem [resolvable:$true] %s14
      %17 = dma.hbm_to_vmem [thread:$0]  %s0, 128, %s15, [#allocation3]
    $region5: #{tpu_custom_call.1} parent=1 // pred_fallthru
      _
    // Predicated region
    $region6: #{tpu_custom_call.1} parent=1 // pred_check
      _
    $region7: #{tpu_custom_call.1} parent=1 // pred_check_branch
      %19 = sbr.rel (0) target = $region9
    $region8: #{tpu_custom_call.1} parent=1 // pred_region
      %20 = dma.done [#allocation3], 128
    $region9: #{tpu_custom_call.1} parent=1 // pred_fallthru
      _
    %v21 = vld [vmem:[#allocation2] sm:$0xff]
    %22 = vrot.lane.b32.xlu0 %v21, 1
    %v23 = vpop.permute.xlu0 %22
    %24 = vst [vmem:[#allocation5] sm:$0xff] %v23
    // Predicated region
    $region10: #{tpu_custom_call.1} parent=1 // pred_check
      _
    $region11: #{tpu_custom_call.1} parent=1 // pred_check_branch
      %26 = sbr.rel (0) target = $region13
    $region12: #{tpu_custom_call.1} parent=1 // pred_region
      %s28 = ssub.s32 128, 128
      %29 = vsyncadd [#allocation4], %s28
      %s31 = sshll.u32 [#allocation5], 4
      %s32 = int_to_ptr.vmem [resolvable:$true] %s31
      %34 = dma.vmem_to_hbm [thread:$0]  %s32, 128, %s1, [#allocation4]
    $region13: #{tpu_custom_call.1} parent=1 // pred_fallthru
      _
    // Predicated region
    $region14: #{tpu_custom_call.1} parent=1 // pred_check
      _
    $region15: #{tpu_custom_call.1} parent=1 // pred_check_branch
      %36 = sbr.rel (0) target = $region17
    $region16: #{tpu_custom_call.1} parent=1 // pred_region
      %37 = dma.done [#allocation4], 128
    $region17: #{tpu_custom_call.1} parent=1 // pred_fallthru
      _
    %38 = vsyncpa [#allocation3], 1
    %39 = vsyncpa [#allocation4], 1

</llo_original>
